<compile_context>
chip_gen: v6e
topology: v6e:2x2x1
jax: 0.10.0
libtpu: 0.0.40
codegen_flags: <defaults>
</compile_context>

<pallas_src>
import functools

import jax
import jax.numpy as jnp
import numpy as np
from jax import lax
from jax.experimental import pallas as pl
from jax.experimental.pallas import tpu as pltpu

BN_EPS = 1e-5
_LANE = 128
_VMEM_LIMIT = 48 * 1024 * 1024  # safe on v7x (64 MiB physical), ample on v5e/v6e


def _round_up(x, m):
    return (x + m - 1) // m * m


# ----------------------------------------------------------------------------
# Kernel A: tiled conv-as-matmul (bf16 MXU, f32 acc) + BN stats accumulation
# ----------------------------------------------------------------------------
def _conv_stats_kernel(xcol_ref, w_ref, z_ref, sum_ref, ssq_ref):
    @pl.when(pl.program_id(0) == 0)
    def _init():
        sum_ref[...] = jnp.zeros_like(sum_ref)
        ssq_ref[...] = jnp.zeros_like(ssq_ref)

    z = jnp.dot(xcol_ref[...], w_ref[...], preferred_element_type=jnp.float32)
    z_ref[...] = z
    # Per-channel running sums for BatchNorm (single-sweep E[z], E[z^2]).
    sum_ref[...] += jnp.sum(z, axis=0, keepdims=True)
    ssq_ref[...] += jnp.sum(z * z, axis=0, keepdims=True)


def _conv_stats(xcol, wmat, *, tile_m):
    m_pad, k_pad = xcol.shape
    c_pad = wmat.shape[1]
    grid = (m_pad // tile_m,)
    return pl.pallas_call(
        _conv_stats_kernel,
        out_shape=(
            jax.ShapeDtypeStruct((m_pad, c_pad), jnp.float32),  # pre-BN activations
            jax.ShapeDtypeStruct((1, c_pad), jnp.float32),      # sum(z)
            jax.ShapeDtypeStruct((1, c_pad), jnp.float32),      # sum(z*z)
        ),
        grid_spec=pltpu.PrefetchScalarGridSpec(
            num_scalar_prefetch=0,
            grid=grid,
            in_specs=[
                pl.BlockSpec((tile_m, k_pad), lambda i: (i, 0)),   # im2col tile
                pl.BlockSpec((k_pad, c_pad), lambda i: (0, 0)),    # weights (resident)
            ],
            out_specs=[
                pl.BlockSpec((tile_m, c_pad), lambda i: (i, 0)),
                pl.BlockSpec((1, c_pad), lambda i: (0, 0)),        # accumulator
                pl.BlockSpec((1, c_pad), lambda i: (0, 0)),        # accumulator
            ],
        ),
        compiler_params=pltpu.CompilerParams(
            dimension_semantics=("arbitrary",),  # M axis carries the BN reduction
            vmem_limit_bytes=_VMEM_LIMIT,
        ),
    )(xcol, wmat)


# ----------------------------------------------------------------------------
# Kernel B: apply folded BN affine + ReLU (one FMA + max per element)
# ----------------------------------------------------------------------------
def _bn_relu_kernel(z_ref, scale_ref, shift_ref, o_ref):
    y = z_ref[...] * scale_ref[...] + shift_ref[...]
    o_ref[...] = jnp.maximum(y, 0.0).astype(o_ref.dtype)


def _bn_relu(z, scale, shift, *, tile_m, out_dtype):
    m_pad, c_pad = z.shape
    grid = (m_pad // tile_m,)
    return pl.pallas_call(
        _bn_relu_kernel,
        out_shape=jax.ShapeDtypeStruct((m_pad, c_pad), out_dtype),
        grid_spec=pltpu.PrefetchScalarGridSpec(
            num_scalar_prefetch=0,
            grid=grid,
            in_specs=[
                pl.BlockSpec((tile_m, c_pad), lambda i: (i, 0)),
                pl.BlockSpec((1, c_pad), lambda i: (0, 0)),
                pl.BlockSpec((1, c_pad), lambda i: (0, 0)),
            ],
            out_specs=pl.BlockSpec((tile_m, c_pad), lambda i: (i, 0)),
        ),
        compiler_params=pltpu.CompilerParams(
            dimension_semantics=("parallel",),   # pure streaming pass
            vmem_limit_bytes=_VMEM_LIMIT,
        ),
    )(z, scale, shift)


# ----------------------------------------------------------------------------
# Glue: im2col (pad=1, 3x3), weight layout, padding to lane-dense shapes
# ----------------------------------------------------------------------------
def _im2col_3x3(x_nhwc):
    # (N, H, W, C) -> (N*H*W, 9*C); tap-major, channel-minor ordering.
    n, h, w, c = x_nhwc.shape
    xp = jnp.pad(x_nhwc, ((0, 0), (1, 1), (1, 1), (0, 0)))
    cols = [xp[:, dy:dy + h, dx:dx + w, :] for dy in range(3) for dx in range(3)]
    col = jnp.concatenate(cols, axis=-1)          # (N, H, W, 9*C)
    return col.reshape(n * h * w, 9 * c)


def _w_oihw_to_mat(w_oihw):
    # (Cout, Cin, 3, 3) -> (9*Cin, Cout), matching im2col ordering above.
    return jnp.transpose(w_oihw, (2, 3, 1, 0)).reshape(-1, w_oihw.shape[0])


def _conv_bn_relu_stage(x_nhwc, w_oihw, gamma, beta, *, tile_m, out_dtype):
    n, h, w, _ = x_nhwc.shape
    cout, cin = w_oihw.shape[0], w_oihw.shape[1]
    m, k = n * h * w, 9 * cin

    k_pad = _round_up(k, _LANE)
    c_pad = _round_up(cout, _LANE)
    m_pad = _round_up(m, tile_m)

    # im2col as XLA glue -> bf16, zero-pad M and K.  Zero rows/cols contribute
    # exactly zero to the matmul and to the BN sums, so padding is stats-safe.
    xcol = _im2col_3x3(x_nhwc).astype(jnp.bfloat16)
    xcol = jnp.pad(xcol, ((0, m_pad - m), (0, k_pad - k)))

    # Weights -> (Kpad, Cpad) bf16.  Conv bias is intentionally dropped: the
    # batch-mean subtraction of training-mode BN cancels it exactly.
    wmat = _w_oihw_to_mat(w_oihw).astype(jnp.bfloat16)
    wmat = jnp.pad(wmat, ((0, k_pad - k), (0, c_pad - cout)))

    z, zsum, zssq = _conv_stats(xcol, wmat, tile_m=tile_m)

    # Finalize BN stats (tiny per-channel math; biased variance, eps=1e-5).
    inv_m = 1.0 / float(m)
    mean = zsum * inv_m
    var = jnp.maximum(zssq * inv_m - mean * mean, 0.0)
    inv_std = lax.rsqrt(var + BN_EPS)
    g = jnp.pad(gamma.reshape(1, -1), ((0, 0), (0, c_pad - cout)))
    b = jnp.pad(beta.reshape(1, -1), ((0, 0), (0, c_pad - cout)))
    scale = g * inv_std
    shift = b - mean * scale

    y = _bn_relu(z, scale, shift, tile_m=tile_m, out_dtype=out_dtype)
    return y[:m, :cout].reshape(n, h, w, cout)


# ----------------------------------------------------------------------------
# DoubleConv forward (NCHW in, NCHW out)
# ----------------------------------------------------------------------------
@functools.partial(jax.jit, static_argnames=("tile_m",))
def double_conv_forward(x_nchw, params, *, tile_m=1024):
    n, _, h, w = x_nchw.shape
    m = n * h * w
    tile_m = min(tile_m, _round_up(m, 8))          # shrink for tiny inputs

    x = jnp.transpose(x_nchw, (0, 2, 3, 1))        # NCHW -> NHWC (boundary only)

    # conv1 + bn1 + relu (intermediate kept in bf16: it feeds a bf16 matmul)
    y = _conv_bn_relu_stage(x, params["w1"], params["g1"], params["beta1"],
                            tile_m=tile_m, out_dtype=jnp.bfloat16)
    # conv2 + bn2 + relu (final output in f32)
    z = _conv_bn_relu_stage(y, params["w2"], params["g2"], params["beta2"],
                            tile_m=tile_m, out_dtype=jnp.float32)

    return jnp.transpose(z, (0, 3, 1, 2))          # NHWC -> NCHW


# ----------------------------------------------------------------------------
# Pure-JAX reference (f32, keeps the conv bias — BN cancels it)
# ----------------------------------------------------------------------------
def _ref_double_conv(x_nchw, params):
    def conv_bn_relu(x, w, b, g, beta):
        y = lax.conv_general_dilated(
            x, w, window_strides=(1, 1), padding=((1, 1), (1, 1)),
            dimension_numbers=("NCHW", "OIHW", "NCHW"))
        y = y + b.reshape(1, -1, 1, 1)
        mean = jnp.mean(y, axis=(0, 2, 3), keepdims=True)
        var = jnp.mean(jnp.square(y - mean), axis=(0, 2, 3), keepdims=True)
        y = (y - mean) * lax.rsqrt(var + BN_EPS)
        y = y * g.reshape(1, -1, 1, 1) + beta.reshape(1, -1, 1, 1)
        return jnp.maximum(y, 0.0)

    y = conv_bn_relu(x_nchw, params["w1"], params["b1"].reshape(-1),
                     params["g1"].reshape(-1), params["beta1"].reshape(-1))
    return conv_bn_relu(y, params["w2"], params["b2"].reshape(-1),
                        params["g2"].reshape(-1), params["beta2"].reshape(-1))


# ----------------------------------------------------------------------------
# Deterministic parameter init (shapes from DoubleConv.__init__)
# ----------------------------------------------------------------------------
def init_params(key, in_channels, out_channels):
    k1, k2, k3, k4 = jax.random.split(key, 4)
    s1 = 1.0 / np.sqrt(in_channels * 9)
    s2 = 1.0 / np.sqrt(out_channels * 9)
    return {
        "w1": jax.random.normal(k1, (out_channels, in_channels, 3, 3),
                                jnp.float32) * s1,
        "b1": jax.random.normal(k2, (1, out_channels), jnp.float32) * s1,
        "g1": jnp.ones((1, out_channels), jnp.float32),   # BN affine defaults
        "beta1": jnp.zeros((1, out_channels), jnp.float32),
        "w2": jax.random.normal(k3, (out_channels, out_channels, 3, 3),
                                jnp.float32) * s2,
        "b2": jax.random.normal(k4, (1, out_channels), jnp.float32) * s2,
        "g2": jnp.ones((1, out_channels), jnp.float32),
        "beta2": jnp.zeros((1, out_channels), jnp.float32),
    }


if __name__ == "__main__":
    key = jax.random.PRNGKey(0)
    kx, kp = jax.random.split(key)

    N, C_IN, C_OUT, H, W = 2, 4, 8, 16, 16
    x = jax.random.normal(kx, (N, C_IN, H, W), jnp.float32)   # NCHW, like PyTorch
    params = init_params(kp, C_IN, C_OUT)

    # tile_m=128 forces a multi-tile grid (M=512 -> 4 steps) so the BN
    # accumulate/finalize path across grid iterations is exercised.
    out = double_conv_forward(x, params, tile_m=128)
    out = jax.block_until_ready(out)

    ref = jax.block_until_ready(_ref_double_conv(x, params))
    np.testing.assert_allclose(np.asarray(out), np.asarray(ref),
                               rtol=5e-2, atol=5e-2)
    assert out.shape == (N, C_OUT, H, W)

    print("KERNEL_OK")
</pallas_src>

<mosaic_0001>
module attributes {stable_mosaic.version = 11 : i64} {
  func.func @_conv_stats_kernel(%arg0: i32, %arg1: memref<128x128xbf16, #tpu.memory_space<vmem>>, %arg2: memref<128x128xbf16, #tpu.memory_space<vmem>>, %arg3: memref<128x128xf32, #tpu.memory_space<vmem>>, %arg4: memref<1x128xf32, #tpu.memory_space<vmem>>, %arg5: memref<1x128xf32, #tpu.memory_space<vmem>>) attributes {dimension_semantics = [#tpu.dimension_semantics<arbitrary>], iteration_bounds = array<i64: 4>, scalar_prefetch = 0 : i64, scratch_operands = 0 : i64, tpu.core_type = #tpu.core_type<tc>, window_params = [{transform_indices = @transform_0, window_bounds = array<i64: 128, 128>}, {pipeline_mode = #tpu.pipeline_mode<synchronous>, transform_indices = @transform_1, window_bounds = array<i64: 128, 128>}, {transform_indices = @transform_2, window_bounds = array<i64: 128, 128>}, {pipeline_mode = #tpu.pipeline_mode<synchronous>, transform_indices = @transform_3, window_bounds = array<i64: 1, 128>}, {pipeline_mode = #tpu.pipeline_mode<synchronous>, transform_indices = @transform_4, window_bounds = array<i64: 1, 128>}]} {
    %c0_i32 = arith.constant 0 : i32
    %0 = arith.cmpi eq, %arg0, %c0_i32 : i32
    %1 = arith.extui %0 : i1 to i32
    %c0_i32_0 = arith.constant 0 : i32
    %2 = arith.cmpi ne, %1, %c0_i32_0 : i32
    scf.if %2 {
      %cst_16 = arith.constant 0.000000e+00 : f32
      %18 = vector.broadcast %cst_16 : f32 to vector<1x128xf32>
      %c0_17 = arith.constant 0 : index
      %c0_18 = arith.constant 0 : index
      %19 = vector.load %arg4[%c0_17, %c0_18] : memref<1x128xf32, #tpu.memory_space<vmem>>, vector<1x128xf32>
      tpu.vector_store %arg4[%c0_17, %c0_18], %18 {strides = array<i32>} : memref<1x128xf32, #tpu.memory_space<vmem>>, vector<1x128xf32>,
      %cst_19 = arith.constant 0.000000e+00 : f32
      %20 = vector.broadcast %cst_19 : f32 to vector<1x128xf32>
      %c0_20 = arith.constant 0 : index
      %c0_21 = arith.constant 0 : index
      %21 = vector.load %arg5[%c0_20, %c0_21] : memref<1x128xf32, #tpu.memory_space<vmem>>, vector<1x128xf32>
      tpu.vector_store %arg5[%c0_20, %c0_21], %20 {strides = array<i32>} : memref<1x128xf32, #tpu.memory_space<vmem>>, vector<1x128xf32>,
    } else {
    }
    %c0 = arith.constant 0 : index
    %c0_1 = arith.constant 0 : index
    %3 = vector.load %arg1[%c0, %c0_1] : memref<128x128xbf16, #tpu.memory_space<vmem>>, vector<128x128xbf16>
    %c0_2 = arith.constant 0 : index
    %c0_3 = arith.constant 0 : index
    %4 = vector.load %arg2[%c0_2, %c0_3] : memref<128x128xbf16, #tpu.memory_space<vmem>>, vector<128x128xbf16>
    %cst = arith.constant dense<0.000000e+00> : vector<128x128xf32>
    %5 = tpu.matmul %3, %4, %cst {dimension_numbers = #tpu.dot_dimension_numbers<[1], [0], [0], [1], [0, 0, 1, 1], [], []>} : vector<128x128xbf16>, vector<128x128xbf16>, vector<128x128xf32> -> vector<128x128xf32>
    %c0_4 = arith.constant 0 : index
    %c0_5 = arith.constant 0 : index
    %6 = vector.load %arg3[%c0_4, %c0_5] : memref<128x128xf32, #tpu.memory_space<vmem>>, vector<128x128xf32>
    tpu.vector_store %arg3[%c0_4, %c0_5], %5 {strides = array<i32>} : memref<128x128xf32, #tpu.memory_space<vmem>>, vector<128x128xf32>,
    %c0_6 = arith.constant 0 : index
    %c0_7 = arith.constant 0 : index
    %7 = vector.load %arg4[%c0_6, %c0_7] : memref<1x128xf32, #tpu.memory_space<vmem>>, vector<1x128xf32>
    %cst_8 = arith.constant dense<0.000000e+00> : vector<128xf32>
    %8 = vector.multi_reduction <add>, %5, %cst_8 [0] : vector<128x128xf32> to vector<128xf32>
    %9 = vector.shape_cast %8 : vector<128xf32> to vector<1x128xf32>
    %10 = arith.addf %7, %9 : vector<1x128xf32>
    %c0_9 = arith.constant 0 : index
    %c0_10 = arith.constant 0 : index
    %11 = vector.load %arg4[%c0_9, %c0_10] : memref<1x128xf32, #tpu.memory_space<vmem>>, vector<1x128xf32>
    tpu.vector_store %arg4[%c0_9, %c0_10], %10 {strides = array<i32>} : memref<1x128xf32, #tpu.memory_space<vmem>>, vector<1x128xf32>,
    %c0_11 = arith.constant 0 : index
    %c0_12 = arith.constant 0 : index
    %12 = vector.load %arg5[%c0_11, %c0_12] : memref<1x128xf32, #tpu.memory_space<vmem>>, vector<1x128xf32>
    %13 = arith.mulf %5, %5 : vector<128x128xf32>
    %cst_13 = arith.constant dense<0.000000e+00> : vector<128xf32>
    %14 = vector.multi_reduction <add>, %13, %cst_13 [0] : vector<128x128xf32> to vector<128xf32>
    %15 = vector.shape_cast %14 : vector<128xf32> to vector<1x128xf32>
    %16 = arith.addf %12, %15 : vector<1x128xf32>
    %c0_14 = arith.constant 0 : index
    %c0_15 = arith.constant 0 : index
    %17 = vector.load %arg5[%c0_14, %c0_15] : memref<1x128xf32, #tpu.memory_space<vmem>>, vector<1x128xf32>
    tpu.vector_store %arg5[%c0_14, %c0_15], %16 {strides = array<i32>} : memref<1x128xf32, #tpu.memory_space<vmem>>, vector<1x128xf32>,
    return
  }
  func.func @transform_0(%arg0: i32) -> (i32, i32) {
    %c0_i32 = arith.constant 0 : i32
    %c0_i32_0 = arith.constant 0 : i32
    return %arg0, %c0_i32 : i32, i32
  }
  func.func @transform_1(%arg0: i32) -> (i32, i32) {
    %c0_i32 = arith.constant 0 : i32
    %c0_i32_0 = arith.constant 0 : i32
    %c0_i32_1 = arith.constant 0 : i32
    return %c0_i32, %c0_i32_0 : i32, i32
  }
  func.func @transform_2(%arg0: i32) -> (i32, i32) {
    %c0_i32 = arith.constant 0 : i32
    %c0_i32_0 = arith.constant 0 : i32
    return %arg0, %c0_i32 : i32, i32
  }
  func.func @transform_3(%arg0: i32) -> (i32, i32) {
    %c0_i32 = arith.constant 0 : i32
    %c0_i32_0 = arith.constant 0 : i32
    %c0_i32_1 = arith.constant 0 : i32
    return %c0_i32, %c0_i32_0 : i32, i32
  }
  func.func @transform_4(%arg0: i32) -> (i32, i32) {
    %c0_i32 = arith.constant 0 : i32
    %c0_i32_0 = arith.constant 0 : i32
    %c0_i32_1 = arith.constant 0 : i32
    return %c0_i32, %c0_i32_0 : i32, i32
  }
}

module attributes {stable_mosaic.version = 11 : i64} {
  func.func @_bn_relu_kernel(%arg0: i32, %arg1: memref<128x128xf32, #tpu.memory_space<vmem>>, %arg2: memref<1x128xf32, #tpu.memory_space<vmem>>, %arg3: memref<1x128xf32, #tpu.memory_space<vmem>>, %arg4: memref<128x128xbf16, #tpu.memory_space<vmem>>) attributes {dimension_semantics = [#tpu.dimension_semantics<parallel>], iteration_bounds = array<i64: 4>, scalar_prefetch = 0 : i64, scratch_operands = 0 : i64, tpu.core_type = #tpu.core_type<tc>, window_params = [{transform_indices = @transform_0, window_bounds = array<i64: 128, 128>}, {pipeline_mode = #tpu.pipeline_mode<synchronous>, transform_indices = @transform_1, window_bounds = array<i64: 1, 128>}, {pipeline_mode = #tpu.pipeline_mode<synchronous>, transform_indices = @transform_2, window_bounds = array<i64: 1, 128>}, {transform_indices = @transform_3, window_bounds = array<i64: 128, 128>}]} {
    %c0 = arith.constant 0 : index
    %c0_0 = arith.constant 0 : index
    %0 = vector.load %arg1[%c0, %c0_0] : memref<128x128xf32, #tpu.memory_space<vmem>>, vector<128x128xf32>
    %c0_1 = arith.constant 0 : index
    %c0_2 = arith.constant 0 : index
    %1 = vector.load %arg2[%c0_1, %c0_2] : memref<1x128xf32, #tpu.memory_space<vmem>>, vector<1x128xf32>
    %2 = vector.broadcast %1 : vector<1x128xf32> to vector<128x128xf32>
    %3 = arith.mulf %0, %2 : vector<128x128xf32>
    %c0_3 = arith.constant 0 : index
    %c0_4 = arith.constant 0 : index
    %4 = vector.load %arg3[%c0_3, %c0_4] : memref<1x128xf32, #tpu.memory_space<vmem>>, vector<1x128xf32>
    %5 = vector.broadcast %4 : vector<1x128xf32> to vector<128x128xf32>
    %6 = arith.addf %3, %5 : vector<128x128xf32>
    %cst = arith.constant 0.000000e+00 : f32
    %7 = vector.broadcast %cst : f32 to vector<128x128xf32>
    %8 = arith.maximumf %6, %7 : vector<128x128xf32>
    %9 = arith.truncf %8 : vector<128x128xf32> to vector<128x128xbf16>
    %c0_5 = arith.constant 0 : index
    %c0_6 = arith.constant 0 : index
    %10 = vector.load %arg4[%c0_5, %c0_6] : memref<128x128xbf16, #tpu.memory_space<vmem>>, vector<128x128xbf16>
    tpu.vector_store %arg4[%c0_5, %c0_6], %9 {strides = array<i32>} : memref<128x128xbf16, #tpu.memory_space<vmem>>, vector<128x128xbf16>,
    return
  }
  func.func @transform_0(%arg0: i32) -> (i32, i32) {
    %c0_i32 = arith.constant 0 : i32
    %c0_i32_0 = arith.constant 0 : i32
    return %arg0, %c0_i32 : i32, i32
  }
  func.func @transform_1(%arg0: i32) -> (i32, i32) {
    %c0_i32 = arith.constant 0 : i32
    %c0_i32_0 = arith.constant 0 : i32
    %c0_i32_1 = arith.constant 0 : i32
    return %c0_i32, %c0_i32_0 : i32, i32
  }
  func.func @transform_2(%arg0: i32) -> (i32, i32) {
    %c0_i32 = arith.constant 0 : i32
    %c0_i32_0 = arith.constant 0 : i32
    %c0_i32_1 = arith.constant 0 : i32
    return %c0_i32, %c0_i32_0 : i32, i32
  }
  func.func @transform_3(%arg0: i32) -> (i32, i32) {
    %c0_i32 = arith.constant 0 : i32
    %c0_i32_0 = arith.constant 0 : i32
    return %arg0, %c0_i32 : i32, i32
  }
}

module attributes {stable_mosaic.version = 11 : i64} {
  func.func @_bn_relu_kernel(%arg0: i32, %arg1: memref<128x128xf32, #tpu.memory_space<vmem>>, %arg2: memref<1x128xf32, #tpu.memory_space<vmem>>, %arg3: memref<1x128xf32, #tpu.memory_space<vmem>>, %arg4: memref<128x128xf32, #tpu.memory_space<vmem>>) attributes {dimension_semantics = [#tpu.dimension_semantics<parallel>], iteration_bounds = array<i64: 4>, scalar_prefetch = 0 : i64, scratch_operands = 0 : i64, tpu.core_type = #tpu.core_type<tc>, window_params = [{transform_indices = @transform_0, window_bounds = array<i64: 128, 128>}, {pipeline_mode = #tpu.pipeline_mode<synchronous>, transform_indices = @transform_1, window_bounds = array<i64: 1, 128>}, {pipeline_mode = #tpu.pipeline_mode<synchronous>, transform_indices = @transform_2, window_bounds = array<i64: 1, 128>}, {transform_indices = @transform_3, window_bounds = array<i64: 128, 128>}]} {
    %c0 = arith.constant 0 : index
    %c0_0 = arith.constant 0 : index
    %0 = vector.load %arg1[%c0, %c0_0] : memref<128x128xf32, #tpu.memory_space<vmem>>, vector<128x128xf32>
    %c0_1 = arith.constant 0 : index
    %c0_2 = arith.constant 0 : index
    %1 = vector.load %arg2[%c0_1, %c0_2] : memref<1x128xf32, #tpu.memory_space<vmem>>, vector<1x128xf32>
    %2 = vector.broadcast %1 : vector<1x128xf32> to vector<128x128xf32>
    %3 = arith.mulf %0, %2 : vector<128x128xf32>
    %c0_3 = arith.constant 0 : index
    %c0_4 = arith.constant 0 : index
    %4 = vector.load %arg3[%c0_3, %c0_4] : memref<1x128xf32, #tpu.memory_space<vmem>>, vector<1x128xf32>
    %5 = vector.broadcast %4 : vector<1x128xf32> to vector<128x128xf32>
    %6 = arith.addf %3, %5 : vector<128x128xf32>
    %cst = arith.constant 0.000000e+00 : f32
    %7 = vector.broadcast %cst : f32 to vector<128x128xf32>
    %8 = arith.maximumf %6, %7 : vector<128x128xf32>
    %c0_5 = arith.constant 0 : index
    %c0_6 = arith.constant 0 : index
    %9 = vector.load %arg4[%c0_5, %c0_6] : memref<128x128xf32, #tpu.memory_space<vmem>>, vector<128x128xf32>
    tpu.vector_store %arg4[%c0_5, %c0_6], %8 {strides = array<i32>} : memref<128x128xf32, #tpu.memory_space<vmem>>, vector<128x128xf32>,
    return
  }
  func.func @transform_0(%arg0: i32) -> (i32, i32) {
    %c0_i32 = arith.constant 0 : i32
    %c0_i32_0 = arith.constant 0 : i32
    return %arg0, %c0_i32 : i32, i32
  }
  func.func @transform_1(%arg0: i32) -> (i32, i32) {
    %c0_i32 = arith.constant 0 : i32
    %c0_i32_0 = arith.constant 0 : i32
    %c0_i32_1 = arith.constant 0 : i32
    return %c0_i32, %c0_i32_0 : i32, i32
  }
  func.func @transform_2(%arg0: i32) -> (i32, i32) {
    %c0_i32 = arith.constant 0 : i32
    %c0_i32_0 = arith.constant 0 : i32
    %c0_i32_1 = arith.constant 0 : i32
    return %c0_i32, %c0_i32_0 : i32, i32
  }
  func.func @transform_3(%arg0: i32) -> (i32, i32) {
    %c0_i32 = arith.constant 0 : i32
    %c0_i32_0 = arith.constant 0 : i32
    return %arg0, %c0_i32 : i32, i32
  }
}

</mosaic_0001>

<llo_original>
// kernel: double_conv_forward.5
$region0: #{double_conv_forward.5}
  #allocation0 [shape = 'u32[]', space=smem, size = 0x4, offset = 0x4, fixed_abs, tag = 'smem constant byte address 0x4 - core index']
  #allocation1 [shape = 'u32[144,128]{1,0:T(1,128)}', space=vmem, size = 0x12000, scoped, tag = 'internal scratch']
  %s0 = inlined_call_operand.vmem [shape: f32[512,128], index: 0, kind: input, shape index: {}]
  %s1 = inlined_call_operand.vmem [shape: f32[1,128], index: 1, kind: input, shape index: {}]
  %s2 = inlined_call_operand.vmem [shape: f32[1,128], index: 2, kind: input, shape index: {}]
  %s3 = inlined_call_operand.vmem [shape: bf16[512,128], index: 3, kind: output, shape index: {}]
  %s4 = sld [smem:[#allocation0]]
  $region45: #{double_conv_forward.5} parent=0
    _
  %s6 = ssub.s32 1, %s4
  %s7 = scalar_select 0, %s6, %s4
  loop: start=0, step=1, limit=6
  $region2: #{double_conv_forward.5} parent=0 // loop_pre_header
    _
  $region3: #{double_conv_forward.5} parent=0 // loop_header
    %s9 = sphi 0, %s13
    %p10 = scmp.ge.s32.totalorder %s9, 6
    %s19 = sphi 0, %s21
    %s22 = sphi 0, %s19
    %s23 = sphi 0, %s22
    %s39 = sphi 0, %s23
    %s43 = sphi 0, %s43
    %s45 = sphi 0, %s43
    %s46 = sphi 0, %s45
    %s60 = sphi 0, %s46
    %s64 = sphi 0, %s64
    %s66 = sphi 0, %s64
    %s67 = sphi 0, %s66
    %s81 = sphi 0, %s67
    %s87 = sphi 0, %s89
    %s90 = sphi 0, %s87
    %s91 = sphi 0, %s90
    %s107 = sphi 0, %s91
  $region4: #{double_conv_forward.5} parent=0 // loop_header_branch
    %12 = sbr.rel (%p10) target = $region8
  $region5: #{double_conv_forward.5} parent=0 // loop_body
    %s14 = ssub.s32 %s9, 1
    %s15 = ssub.s32 %s9, 2
    %s16 = sadd.s32 %s9, 1
    %s17 = ssub.s32 %s9, %s16
    %p18 = scmp.eq.s32.totalorder %s17, 0
    %s20 = sadd.s32 %s19, 1
    %s21 = scalar_select %p18, %s19, %s20
    %p24 = pneg %p18
    %p25 = scmp.eq.s32.totalorder %s9, 3
    %p26 = por %p24, %p25
    %p27 = scmp.ne.s32.totalorder %s19, %s22
    %p28 = scmp.eq.s32.totalorder %s9, 0
    %p29 = por %p27, %p28
    %p30 = scmp.ne.s32.totalorder %s19, %s22
    %p31 = scmp.eq.s32.totalorder %s14, 3
    %p32 = por %p30, %p31
    %p33 = scmp.ne.s32.totalorder %s22, %s23
    %p34 = scmp.eq.s32.totalorder %s14, 0
    %p35 = por %p33, %p34
    %p36 = scmp.ne.s32.totalorder %s22, %s23
    %p37 = scmp.eq.s32.totalorder %s15, 3
    %p38 = por %p36, %p37
    %p40 = scmp.ne.s32.totalorder %s23, %s39
    %p41 = scmp.eq.s32.totalorder %s15, 0
    %p42 = por %p40, %p41
    %s44 = sadd.s32 %s43, 1
    %p47 = scmp.eq.s32.totalorder %s9, 3
    %p48 = scmp.ne.s32.totalorder %s43, %s45
    %p49 = scmp.eq.s32.totalorder %s9, 0
    %p50 = por %p48, %p49
    %p51 = scmp.ne.s32.totalorder %s43, %s45
    %p52 = scmp.eq.s32.totalorder %s14, 3
    %p53 = por %p51, %p52
    %p54 = scmp.ne.s32.totalorder %s45, %s46
    %p55 = scmp.eq.s32.totalorder %s14, 0
    %p56 = por %p54, %p55
    %p57 = scmp.ne.s32.totalorder %s45, %s46
    %p58 = scmp.eq.s32.totalorder %s15, 3
    %p59 = por %p57, %p58
    %p61 = scmp.ne.s32.totalorder %s46, %s60
    %p62 = scmp.eq.s32.totalorder %s15, 0
    %p63 = por %p61, %p62
    %s65 = sadd.s32 %s64, 1
    %p68 = scmp.eq.s32.totalorder %s9, 3
    %p69 = scmp.ne.s32.totalorder %s64, %s66
    %p70 = scmp.eq.s32.totalorder %s9, 0
    %p71 = por %p69, %p70
    %p72 = scmp.ne.s32.totalorder %s64, %s66
    %p73 = scmp.eq.s32.totalorder %s14, 3
    %p74 = por %p72, %p73
    %p75 = scmp.ne.s32.totalorder %s66, %s67
    %p76 = scmp.eq.s32.totalorder %s14, 0
    %p77 = por %p75, %p76
    %p78 = scmp.ne.s32.totalorder %s66, %s67
    %p79 = scmp.eq.s32.totalorder %s15, 3
    %p80 = por %p78, %p79
    %p82 = scmp.ne.s32.totalorder %s67, %s81
    %p83 = scmp.eq.s32.totalorder %s15, 0
    %p84 = por %p82, %p83
    %s85 = ssub.s32 %s9, %s16
    %p86 = scmp.eq.s32.totalorder %s85, 0
    %s88 = sadd.s32 %s87, 1
    %s89 = scalar_select %p86, %s87, %s88
    %p92 = pneg %p86
    %p93 = scmp.eq.s32.totalorder %s9, 3
    %p94 = por %p92, %p93
    %p95 = scmp.ne.s32.totalorder %s87, %s90
    %p96 = scmp.eq.s32.totalorder %s9, 0
    %p97 = por %p95, %p96
    %p98 = scmp.ne.s32.totalorder %s87, %s90
    %p99 = scmp.eq.s32.totalorder %s14, 3
    %p100 = por %p98, %p99
    %p101 = scmp.ne.s32.totalorder %s90, %s91
    %p102 = scmp.eq.s32.totalorder %s14, 0
    %p103 = por %p101, %p102
    %p104 = scmp.ne.s32.totalorder %s90, %s91
    %p105 = scmp.eq.s32.totalorder %s15, 3
    %p106 = por %p104, %p105
    %p108 = scmp.ne.s32.totalorder %s91, %s107
    %p109 = scmp.eq.s32.totalorder %s15, 0
    %p110 = por %p108, %p109
    %p111 = scmp.le.s32.totalorder 1, %s9
    %p112 = scmp.lt.s32.totalorder %s9, 5
    %p113 = pnand %p111, %p112
    %p114 = pneg %p113
    // Predicated region
    $region9: #{double_conv_forward.5} parent=5 // pred_check
      _
    $region10: #{double_conv_forward.5} parent=5 // pred_check_branch
      %116 = sbr.rel (%p113) target = $region12
    $region11: #{double_conv_forward.5} parent=5 // pred_region
      %s117 = ssub.s32 %s9, 1
      // Predicated region
      $region13: #{double_conv_forward.5} parent=11 // pred_check
        %p118 = pneg %p56
      $region14: #{double_conv_forward.5} parent=11 // pred_check_branch
        %120 = sbr.rel (%p118) target = $region16
      $region15: #{double_conv_forward.5} parent=11 // pred_region
        _
      $region16: #{double_conv_forward.5} parent=11 // pred_fallthru
        _
      // Predicated region
      $region17: #{double_conv_forward.5} parent=11 // pred_check
        %p121 = pneg %p77
      $region18: #{double_conv_forward.5} parent=11 // pred_check_branch
        %123 = sbr.rel (%p121) target = $region20
      $region19: #{double_conv_forward.5} parent=11 // pred_region
        _
      $region20: #{double_conv_forward.5} parent=11 // pred_fallthru
        _
    $region12: #{double_conv_forward.5} parent=5 // pred_fallthru
      _
    %p124 = scmp.lt.s32.totalorder %s9, 4
    // Predicated region
    $region21: #{double_conv_forward.5} parent=5 // pred_check
      %p125 = pneg %p124
    $region22: #{double_conv_forward.5} parent=5 // pred_check_branch
      %127 = sbr.rel (%p125) target = $region24
    $region23: #{double_conv_forward.5} parent=5 // pred_region
      // Predicated region
      $region25: #{double_conv_forward.5} parent=23 // pred_check
        %p128 = pneg %p29
      $region26: #{double_conv_forward.5} parent=23 // pred_check_branch
        %130 = sbr.rel (%p128) target = $region28
      $region27: #{double_conv_forward.5} parent=23 // pred_region
        %s131 = smul.u32 16, %s9
        %p132 = scmp.lt.s32.totalorder %s131, 63
        %s133 = scalar_select %p132, %s131, 63
        %s134 = smul.addr %s133, 8
        %s135 = scalar_lea.vmem %s0, %s134
        %s136 = smul.u32 16, %s9
      $region28: #{double_conv_forward.5} parent=23 // pred_fallthru
        _
    $region24: #{double_conv_forward.5} parent=5 // pred_fallthru
      _
    %p137 = scmp.le.s32.totalorder 1, %s9
    %p138 = scmp.lt.s32.totalorder %s9, 5
    %p139 = pnand %p137, %p138
    %p140 = pneg %p139
    // Predicated region
    $region29: #{double_conv_forward.5} parent=5 // pred_check
      _
    $region30: #{double_conv_forward.5} parent=5 // pred_check_branch
      %142 = sbr.rel (%p139) target = $region32
    $region31: #{double_conv_forward.5} parent=5 // pred_region
      %s143 = ssub.s32 %s9, 1
      %s144 = smul.u32 16, %s14
      %p145 = scmp.lt.s32.totalorder %s144, 63
      %s146 = scalar_select %p145, %s144, 63
      %s147 = smul.addr %s146, 8
      %s148 = scalar_lea.vmem %s0, %s147
      %p149 = pneg %p35
      %p150 = pneg %p32
      %p151 = pneg %p56
      %p152 = pneg %p53
      %p153 = pneg %p77
      %p154 = pneg %p74
      %p155 = pneg %p103
      %p156 = pneg %p100
      %s157 = smul.u32 16, %s14
      %p158 = scmp.lt.s32.totalorder %s157, 63
      %s159 = scalar_select %p158, %s157, 63
      %s160 = smul.addr %s159, 4
      %s161 = scalar_lea.vmem %s3, %s160
      %s162 = smul.u32 16, %s14
      %p163 = scmp.lt.s32.totalorder %s162, 63
      %s164 = scalar_select %p163, %s162, 63
      %s165 = smul.addr %s164, 8
      %s166 = scalar_lea.vmem %s0, %s165
      %s167 = smul.u32 16, %s14
      %s168 = smul.u32 16, %s14
      %p169 = scmp.lt.s32.totalorder %s168, 63
      %s170 = scalar_select %p169, %s168, 63
      %s171 = smul.addr %s170, 4
      %s172 = scalar_lea.vmem %s3, %s171
      %s173 = smul.u32 16, %s14
      %v174 = vld [vmem:[%s166] sm:$0xff]
      %v175 = vld [vmem:[%s166 + $0x8] sm:$0xff]
      %v176 = vld [vmem:[%s166 + $0x10] sm:$0xff]
      %v177 = vld [vmem:[%s166 + $0x18] sm:$0xff]
      %v178 = vld [vmem:[%s166 + $0x20] sm:$0xff]
      %v179 = vld [vmem:[%s166 + $0x28] sm:$0xff]
      %v180 = vld [vmem:[%s166 + $0x30] sm:$0xff]
      %v181 = vld [vmem:[%s166 + $0x38] sm:$0xff]
      %v182 = vld [vmem:[%s166 + $0x40] sm:$0xff]
      %v183 = vld [vmem:[%s166 + $0x48] sm:$0xff]
      %v184 = vld [vmem:[%s166 + $0x50] sm:$0xff]
      %v185 = vld [vmem:[%s166 + $0x58] sm:$0xff]
      %v186 = vld [vmem:[%s166 + $0x60] sm:$0xff]
      %v187 = vld [vmem:[%s166 + $0x68] sm:$0xff]
      %v188 = vld [vmem:[%s166 + $0x70] sm:$0xff]
      %v189 = vld [vmem:[%s166 + $0x78] sm:$0xff]
      %v190 = vld [vmem:[%s1] sm:$0x1]
      %v192 = vlaneseq
      %v193 = vshrl.u32 %v192, 7
      %v194 = vsub.s32 0, %v193
      %v195 = vrot.slane %v190, %v194
      %v197 = vmul.f32 %v174, %v195
      %v198 = vmul.f32 %v175, %v195
      %v199 = vmul.f32 %v176, %v195
      %v200 = vmul.f32 %v177, %v195
      %v201 = vmul.f32 %v178, %v195
      %v202 = vmul.f32 %v179, %v195
      %v203 = vmul.f32 %v180, %v195
      %v204 = vmul.f32 %v181, %v195
      %v205 = vmul.f32 %v182, %v195
      %v206 = vmul.f32 %v183, %v195
      %v207 = vmul.f32 %v184, %v195
      %v208 = vmul.f32 %v185, %v195
      %v209 = vmul.f32 %v186, %v195
      %v210 = vmul.f32 %v187, %v195
      %v211 = vmul.f32 %v188, %v195
      %v212 = vmul.f32 %v189, %v195
      %v213 = vld [vmem:[%s2] sm:$0x1]
      %v215 = vlaneseq
      %v216 = vshrl.u32 %v215, 7
      %v217 = vsub.s32 0, %v216
      %v218 = vrot.slane %v213, %v217
      %v220 = vadd.f32 %v197, %v218
      %v221 = vadd.f32 %v198, %v218
      %v222 = vadd.f32 %v199, %v218
      %v223 = vadd.f32 %v200, %v218
      %v224 = vadd.f32 %v201, %v218
      %v225 = vadd.f32 %v202, %v218
      %v226 = vadd.f32 %v203, %v218
      %v227 = vadd.f32 %v204, %v218
      %v228 = vadd.f32 %v205, %v218
      %v229 = vadd.f32 %v206, %v218
      %v230 = vadd.f32 %v207, %v218
      %v231 = vadd.f32 %v208, %v218
      %v232 = vadd.f32 %v209, %v218
      %v233 = vadd.f32 %v210, %v218
      %v234 = vadd.f32 %v211, %v218
      %v235 = vadd.f32 %v212, %v218
      %v236 = vmax.f32 %v220, 0.0
      %v237 = vmax.f32 %v221, 0.0
      %v238 = vmax.f32 %v222, 0.0
      %v239 = vmax.f32 %v223, 0.0
      %v240 = vmax.f32 %v224, 0.0
      %v241 = vmax.f32 %v225, 0.0
      %v242 = vmax.f32 %v226, 0.0
      %v243 = vmax.f32 %v227, 0.0
      %v244 = vmax.f32 %v228, 0.0
      %v245 = vmax.f32 %v229, 0.0
      %v246 = vmax.f32 %v230, 0.0
      %v247 = vmax.f32 %v231, 0.0
      %v248 = vmax.f32 %v232, 0.0
      %v249 = vmax.f32 %v233, 0.0
      %v250 = vmax.f32 %v234, 0.0
      %v251 = vmax.f32 %v235, 0.0
      %v252 = vpack.c.bf16 %v237, %v236
      %v253 = vpack.c.bf16 %v239, %v238
      %v254 = vpack.c.bf16 %v241, %v240
      %v255 = vpack.c.bf16 %v243, %v242
      %v256 = vpack.c.bf16 %v245, %v244
      %v257 = vpack.c.bf16 %v247, %v246
      %v258 = vpack.c.bf16 %v249, %v248
      %v259 = vpack.c.bf16 %v251, %v250
      %v268 = vunpack.c.l.b16 %v252
      %v269 = vunpack.c.h.b16 %v252
      %v270 = vunpack.c.l.b16 %v253
      %v271 = vunpack.c.h.b16 %v253
      %v272 = vunpack.c.l.b16 %v254
      %v273 = vunpack.c.h.b16 %v254
      %v274 = vunpack.c.l.b16 %v255
      %v275 = vunpack.c.h.b16 %v255
      %v276 = vunpack.c.l.b16 %v256
      %v277 = vunpack.c.h.b16 %v256
      %v278 = vunpack.c.l.b16 %v257
      %v279 = vunpack.c.h.b16 %v257
      %v280 = vunpack.c.l.b16 %v258
      %v281 = vunpack.c.h.b16 %v258
      %v282 = vunpack.c.l.b16 %v259
      %v283 = vunpack.c.h.b16 %v259
      %v284 = vpack.c.b16 %v268, %v268
      %v285 = vpack.c.b16 %v269, %v269
      %v286 = vpack.c.b16 %v270, %v270
      %v287 = vpack.c.b16 %v271, %v271
      %v288 = vpack.c.b16 %v272, %v272
      %v289 = vpack.c.b16 %v273, %v273
      %v290 = vpack.c.b16 %v274, %v274
      %v291 = vpack.c.b16 %v275, %v275
      %v292 = vpack.c.b16 %v276, %v276
      %v293 = vpack.c.b16 %v277, %v277
      %v294 = vpack.c.b16 %v278, %v278
      %v295 = vpack.c.b16 %v279, %v279
      %v296 = vpack.c.b16 %v280, %v280
      %v297 = vpack.c.b16 %v281, %v281
      %v298 = vpack.c.b16 %v282, %v282
      %v299 = vpack.c.b16 %v283, %v283
      %316 = vst [vmem:[%s172] sm:$0xf] %v284
      %317 = vst [vmem:[%s172 + $0x4] sm:$0xf] %v285
      %318 = vst [vmem:[%s172 + $0x8] sm:$0xf] %v286
      %319 = vst [vmem:[%s172 + $0xc] sm:$0xf] %v287
      %320 = vst [vmem:[%s172 + $0x10] sm:$0xf] %v288
      %321 = vst [vmem:[%s172 + $0x14] sm:$0xf] %v289
      %322 = vst [vmem:[%s172 + $0x18] sm:$0xf] %v290
      %323 = vst [vmem:[%s172 + $0x1c] sm:$0xf] %v291
      %324 = vst [vmem:[%s172 + $0x20] sm:$0xf] %v292
      %325 = vst [vmem:[%s172 + $0x24] sm:$0xf] %v293
      %326 = vst [vmem:[%s172 + $0x28] sm:$0xf] %v294
      %327 = vst [vmem:[%s172 + $0x2c] sm:$0xf] %v295
      %328 = vst [vmem:[%s172 + $0x30] sm:$0xf] %v296
      %329 = vst [vmem:[%s172 + $0x34] sm:$0xf] %v297
      %330 = vst [vmem:[%s172 + $0x38] sm:$0xf] %v298
      %331 = vst [vmem:[%s172 + $0x3c] sm:$0xf] %v299
      %s332 = smul.u32 16, %s14
      %p333 = scmp.lt.s32.totalorder %s332, 63
      %s334 = scalar_select %p333, %s332, 63
      %s335 = smul.addr %s334, 4
      %s336 = scalar_lea.vmem %s3, %s335
      // Predicated region
      $region33: #{double_conv_forward.5} parent=31 // pred_check
        %p337 = pneg %p100
      $region34: #{double_conv_forward.5} parent=31 // pred_check_branch
        %339 = sbr.rel (%p337) target = $region36
      $region35: #{double_conv_forward.5} parent=31 // pred_region
        %s340 = smul.u32 16, %s14
      $region36: #{double_conv_forward.5} parent=31 // pred_fallthru
        _
    $region32: #{double_conv_forward.5} parent=5 // pred_fallthru
      _
    %p341 = scmp.le.s32.totalorder 2, %s9
    // Predicated region
    $region37: #{double_conv_forward.5} parent=5 // pred_check
      %p342 = pneg %p341
    $region38: #{double_conv_forward.5} parent=5 // pred_check_branch
      %344 = sbr.rel (%p342) target = $region40
    $region39: #{double_conv_forward.5} parent=5 // pred_region
      %s345 = ssub.s32 %s9, 2
      // Predicated region
      $region41: #{double_conv_forward.5} parent=39 // pred_check
        %p346 = pneg %p106
      $region42: #{double_conv_forward.5} parent=39 // pred_check_branch
        %348 = sbr.rel (%p346) target = $region44
      $region43: #{double_conv_forward.5} parent=39 // pred_region
        %s349 = smul.u32 16, %s15
        %p350 = scmp.lt.s32.totalorder %s349, 63
        %s351 = scalar_select %p350, %s349, 63
        %s352 = smul.addr %s351, 4
        %s353 = scalar_lea.vmem %s3, %s352
      $region44: #{double_conv_forward.5} parent=39 // pred_fallthru
        _
    $region40: #{double_conv_forward.5} parent=5 // pred_fallthru
      _
  $region6: #{double_conv_forward.5} parent=0 // loop_footer
    %s13 = sadd.s32 1, %s9
  $region7: #{double_conv_forward.5} parent=0 // loop_footer_branch
    %8 = sbr.rel target = $region3
  $region8: #{double_conv_forward.5} parent=0 // loop_exit
    _

// kernel: double_conv_forward.4
$region0: #{double_conv_forward.4}
  #allocation0 [shape = 'u32[]', space=smem, size = 0x4, offset = 0x4, fixed_abs, tag = 'smem constant byte address 0x4 - core index']
  #allocation1 [shape = 'u32[144,128]{1,0:T(1,128)}', space=vmem, size = 0x12000, scoped, tag = 'internal scratch']
  %s0 = inlined_call_operand.vmem [shape: bf16[512,128], index: 0, kind: input, shape index: {}]
  %s1 = inlined_call_operand.vmem [shape: bf16[128,128], index: 1, kind: input, shape index: {}]
  %s2 = inlined_call_operand.vmem [shape: f32[512,128], index: 2, kind: output, shape index: {0}]
  %s3 = inlined_call_operand.vmem [shape: f32[1,128], index: 3, kind: output, shape index: {1}]
  %s4 = inlined_call_operand.vmem [shape: f32[1,128], index: 4, kind: output, shape index: {2}]
  %5 = xla_tuple %s2, %s3, %s4
  %s6 = sld [smem:[#allocation0]]
  $region61: #{double_conv_forward.4} parent=0
    _
  %s8 = ssub.s32 1, %s6
  %s9 = scalar_select 0, %s8, %s6
  loop: start=0, step=1, limit=6
  $region2: #{double_conv_forward.4} parent=0 // loop_pre_header
    _
  $region3: #{double_conv_forward.4} parent=0 // loop_header
    %s11 = sphi 0, %s15
    %p12 = scmp.ge.s32.totalorder %s11, 6
    %s21 = sphi 0, %s23
    %s24 = sphi 0, %s21
    %s25 = sphi 0, %s24
    %s41 = sphi 0, %s25
    %s45 = sphi 0, %s45
    %s47 = sphi 0, %s45
    %s48 = sphi 0, %s47
    %s62 = sphi 0, %s48
    %s68 = sphi 0, %s70
    %s71 = sphi 0, %s68
    %s72 = sphi 0, %s71
    %s88 = sphi 0, %s72
    %s92 = sphi 0, %s92
    %s94 = sphi 0, %s92
    %s95 = sphi 0, %s94
    %s109 = sphi 0, %s95
    %s113 = sphi 0, %s113
    %s115 = sphi 0, %s113
    %s116 = sphi 0, %s115
    %s130 = sphi 0, %s116
  $region4: #{double_conv_forward.4} parent=0 // loop_header_branch
    %14 = sbr.rel (%p12) target = $region8
  $region5: #{double_conv_forward.4} parent=0 // loop_body
    %s16 = ssub.s32 %s11, 1
    %s17 = ssub.s32 %s11, 2
    %s18 = sadd.s32 %s11, 1
    %s19 = ssub.s32 %s11, %s18
    %p20 = scmp.eq.s32.totalorder %s19, 0
    %s22 = sadd.s32 %s21, 1
    %s23 = scalar_select %p20, %s21, %s22
    %p26 = pneg %p20
    %p27 = scmp.eq.s32.totalorder %s11, 3
    %p28 = por %p26, %p27
    %p29 = scmp.ne.s32.totalorder %s21, %s24
    %p30 = scmp.eq.s32.totalorder %s11, 0
    %p31 = por %p29, %p30
    %p32 = scmp.ne.s32.totalorder %s21, %s24
    %p33 = scmp.eq.s32.totalorder %s16, 3
    %p34 = por %p32, %p33
    %p35 = scmp.ne.s32.totalorder %s24, %s25
    %p36 = scmp.eq.s32.totalorder %s16, 0
    %p37 = por %p35, %p36
    %p38 = scmp.ne.s32.totalorder %s24, %s25
    %p39 = scmp.eq.s32.totalorder %s17, 3
    %p40 = por %p38, %p39
    %p42 = scmp.ne.s32.totalorder %s25, %s41
    %p43 = scmp.eq.s32.totalorder %s17, 0
    %p44 = por %p42, %p43
    %s46 = sadd.s32 %s45, 1
    %p49 = scmp.eq.s32.totalorder %s11, 3
    %p50 = scmp.ne.s32.totalorder %s45, %s47
    %p51 = scmp.eq.s32.totalorder %s11, 0
    %p52 = por %p50, %p51
    %p53 = scmp.ne.s32.totalorder %s45, %s47
    %p54 = scmp.eq.s32.totalorder %s16, 3
    %p55 = por %p53, %p54
    %p56 = scmp.ne.s32.totalorder %s47, %s48
    %p57 = scmp.eq.s32.totalorder %s16, 0
    %p58 = por %p56, %p57
    %p59 = scmp.ne.s32.totalorder %s47, %s48
    %p60 = scmp.eq.s32.totalorder %s17, 3
    %p61 = por %p59, %p60
    %p63 = scmp.ne.s32.totalorder %s48, %s62
    %p64 = scmp.eq.s32.totalorder %s17, 0
    %p65 = por %p63, %p64
    %s66 = ssub.s32 %s11, %s18
    %p67 = scmp.eq.s32.totalorder %s66, 0
    %s69 = sadd.s32 %s68, 1
    %s70 = scalar_select %p67, %s68, %s69
    %p73 = pneg %p67
    %p74 = scmp.eq.s32.totalorder %s11, 3
    %p75 = por %p73, %p74
    %p76 = scmp.ne.s32.totalorder %s68, %s71
    %p77 = scmp.eq.s32.totalorder %s11, 0
    %p78 = por %p76, %p77
    %p79 = scmp.ne.s32.totalorder %s68, %s71
    %p80 = scmp.eq.s32.totalorder %s16, 3
    %p81 = por %p79, %p80
    %p82 = scmp.ne.s32.totalorder %s71, %s72
    %p83 = scmp.eq.s32.totalorder %s16, 0
    %p84 = por %p82, %p83
    %p85 = scmp.ne.s32.totalorder %s71, %s72
    %p86 = scmp.eq.s32.totalorder %s17, 3
    %p87 = por %p85, %p86
    %p89 = scmp.ne.s32.totalorder %s72, %s88
    %p90 = scmp.eq.s32.totalorder %s17, 0
    %p91 = por %p89, %p90
    %s93 = sadd.s32 %s92, 1
    %p96 = scmp.eq.s32.totalorder %s11, 3
    %p97 = scmp.ne.s32.totalorder %s92, %s94
    %p98 = scmp.eq.s32.totalorder %s11, 0
    %p99 = por %p97, %p98
    %p100 = scmp.ne.s32.totalorder %s92, %s94
    %p101 = scmp.eq.s32.totalorder %s16, 3
    %p102 = por %p100, %p101
    %p103 = scmp.ne.s32.totalorder %s94, %s95
    %p104 = scmp.eq.s32.totalorder %s16, 0
    %p105 = por %p103, %p104
    %p106 = scmp.ne.s32.totalorder %s94, %s95
    %p107 = scmp.eq.s32.totalorder %s17, 3
    %p108 = por %p106, %p107
    %p110 = scmp.ne.s32.totalorder %s95, %s109
    %p111 = scmp.eq.s32.totalorder %s17, 0
    %p112 = por %p110, %p111
    %s114 = sadd.s32 %s113, 1
    %p117 = scmp.eq.s32.totalorder %s11, 3
    %p118 = scmp.ne.s32.totalorder %s113, %s115
    %p119 = scmp.eq.s32.totalorder %s11, 0
    %p120 = por %p118, %p119
    %p121 = scmp.ne.s32.totalorder %s113, %s115
    %p122 = scmp.eq.s32.totalorder %s16, 3
    %p123 = por %p121, %p122
    %p124 = scmp.ne.s32.totalorder %s115, %s116
    %p125 = scmp.eq.s32.totalorder %s16, 0
    %p126 = por %p124, %p125
    %p127 = scmp.ne.s32.totalorder %s115, %s116
    %p128 = scmp.eq.s32.totalorder %s17, 3
    %p129 = por %p127, %p128
    %p131 = scmp.ne.s32.totalorder %s116, %s130
    %p132 = scmp.eq.s32.totalorder %s17, 0
    %p133 = por %p131, %p132
    %p134 = scmp.le.s32.totalorder 1, %s11
    %p135 = scmp.lt.s32.totalorder %s11, 5
    %p136 = pnand %p134, %p135
    %p137 = pneg %p136
    // Predicated region
    $region9: #{double_conv_forward.4} parent=5 // pred_check
      _
    $region10: #{double_conv_forward.4} parent=5 // pred_check_branch
      %139 = sbr.rel (%p136) target = $region12
    $region11: #{double_conv_forward.4} parent=5 // pred_region
      %s140 = ssub.s32 %s11, 1
      // Predicated region
      $region13: #{double_conv_forward.4} parent=11 // pred_check
        %p141 = pneg %p58
      $region14: #{double_conv_forward.4} parent=11 // pred_check_branch
        %143 = sbr.rel (%p141) target = $region16
      $region15: #{double_conv_forward.4} parent=11 // pred_region
        _
      $region16: #{double_conv_forward.4} parent=11 // pred_fallthru
        _
    $region12: #{double_conv_forward.4} parent=5 // pred_fallthru
      _
    %p144 = scmp.lt.s32.totalorder %s11, 4
    // Predicated region
    $region17: #{double_conv_forward.4} parent=5 // pred_check
      %p145 = pneg %p144
    $region18: #{double_conv_forward.4} parent=5 // pred_check_branch
      %147 = sbr.rel (%p145) target = $region20
    $region19: #{double_conv_forward.4} parent=5 // pred_region
      // Predicated region
      $region21: #{double_conv_forward.4} parent=19 // pred_check
        %p148 = pneg %p31
      $region22: #{double_conv_forward.4} parent=19 // pred_check_branch
        %150 = sbr.rel (%p148) target = $region24
      $region23: #{double_conv_forward.4} parent=19 // pred_region
        %s151 = smul.u32 16, %s11
        %p152 = scmp.lt.s32.totalorder %s151, 63
        %s153 = scalar_select %p152, %s151, 63
        %s154 = smul.addr %s153, 4
        %s155 = scalar_lea.vmem %s0, %s154
        %s156 = smul.u32 16, %s11
      $region24: #{double_conv_forward.4} parent=19 // pred_fallthru
        _
    $region20: #{double_conv_forward.4} parent=5 // pred_fallthru
      _
    %p157 = scmp.le.s32.totalorder 1, %s11
    %p158 = scmp.lt.s32.totalorder %s11, 5
    %p159 = pnand %p157, %p158
    %p160 = pneg %p159
    // Predicated region
    $region25: #{double_conv_forward.4} parent=5 // pred_check
      _
    $region26: #{double_conv_forward.4} parent=5 // pred_check_branch
      %162 = sbr.rel (%p159) target = $region28
    $region27: #{double_conv_forward.4} parent=5 // pred_region
      %s163 = ssub.s32 %s11, 1
      %s164 = smul.u32 16, %s16
      %p165 = scmp.lt.s32.totalorder %s164, 63
      %s166 = scalar_select %p165, %s164, 63
      %s167 = smul.addr %s166, 4
      %s168 = scalar_lea.vmem %s0, %s167
      %p169 = pneg %p37
      %p170 = pneg %p34
      %p171 = pneg %p58
      %p172 = pneg %p55
      %p173 = pneg %p84
      %p174 = pneg %p81
      %s175 = smul.u32 16, %s16
      %p176 = scmp.lt.s32.totalorder %s175, 63
      %s177 = scalar_select %p176, %s175, 63
      %s178 = smul.addr %s177, 8
      %s179 = scalar_lea.vmem %s2, %s178
      %p180 = pneg %p105
      %p181 = pneg %p102
      %p182 = pneg %p126
      %p183 = pneg %p123
      %s184 = smul.u32 16, %s16
      %p185 = scmp.lt.s32.totalorder %s184, 63
      %s186 = scalar_select %p185, %s184, 63
      %s187 = smul.addr %s186, 4
      %s188 = scalar_lea.vmem %s0, %s187
      %s189 = smul.u32 16, %s16
      %s190 = smul.u32 16, %s16
      %p191 = scmp.lt.s32.totalorder %s190, 63
      %s192 = scalar_select %p191, %s190, 63
      %s193 = smul.addr %s192, 8
      %s194 = scalar_lea.vmem %s2, %s193
      %s195 = smul.u32 16, %s16
      %p197 = scmp.eq.s32.totalorder %s16, 0
      // Predicated region
      $region29: #{double_conv_forward.4} parent=27 // pred_check
        %p198 = pneg %p197
      $region30: #{double_conv_forward.4} parent=27 // pred_check_branch
        %200 = sbr.rel (%p198) target = $region32
      $region31: #{double_conv_forward.4} parent=27 // pred_region
        %201 = vst [vmem:[%s3] sm:$0x1] 0.0
        %202 = vst [vmem:[%s4] sm:$0x1] 0.0
      $region32: #{double_conv_forward.4} parent=27 // pred_fallthru
        _
      %v203 = vld [vmem:[%s188] sm:$0xf]
      %v204 = vld [vmem:[%s188 + $0x4] sm:$0xf]
      %v205 = vld [vmem:[%s188 + $0x8] sm:$0xf]
      %v206 = vld [vmem:[%s188 + $0xc] sm:$0xf]
      %v207 = vld [vmem:[%s188 + $0x10] sm:$0xf]
      %v208 = vld [vmem:[%s188 + $0x14] sm:$0xf]
      %v209 = vld [vmem:[%s188 + $0x18] sm:$0xf]
      %v210 = vld [vmem:[%s188 + $0x1c] sm:$0xf]
      %v211 = vld [vmem:[%s188 + $0x20] sm:$0xf]
      %v212 = vld [vmem:[%s188 + $0x24] sm:$0xf]
      %v213 = vld [vmem:[%s188 + $0x28] sm:$0xf]
      %v214 = vld [vmem:[%s188 + $0x2c] sm:$0xf]
      %v215 = vld [vmem:[%s188 + $0x30] sm:$0xf]
      %v216 = vld [vmem:[%s188 + $0x34] sm:$0xf]
      %v217 = vld [vmem:[%s188 + $0x38] sm:$0xf]
      %v218 = vld [vmem:[%s188 + $0x3c] sm:$0xf]
      %v219 = vld [vmem:[%s1] sm:$0xf]
      %v220 = vld [vmem:[%s1 + $0x4] sm:$0xf]
      %v221 = vld [vmem:[%s1 + $0x8] sm:$0xf]
      %v222 = vld [vmem:[%s1 + $0xc] sm:$0xf]
      %v223 = vld [vmem:[%s1 + $0x10] sm:$0xf]
      %v224 = vld [vmem:[%s1 + $0x14] sm:$0xf]
      %v225 = vld [vmem:[%s1 + $0x18] sm:$0xf]
      %v226 = vld [vmem:[%s1 + $0x1c] sm:$0xf]
      %v227 = vld [vmem:[%s1 + $0x20] sm:$0xf]
      %v228 = vld [vmem:[%s1 + $0x24] sm:$0xf]
      %v229 = vld [vmem:[%s1 + $0x28] sm:$0xf]
      %v230 = vld [vmem:[%s1 + $0x2c] sm:$0xf]
      %v231 = vld [vmem:[%s1 + $0x30] sm:$0xf]
      %v232 = vld [vmem:[%s1 + $0x34] sm:$0xf]
      %v233 = vld [vmem:[%s1 + $0x38] sm:$0xf]
      %v234 = vld [vmem:[%s1 + $0x3c] sm:$0xf]
      %v251 = vunpack.c.l.b16 %v203
      %v252 = vunpack.c.l.b16 %v204
      %v253 = vunpack.c.l.b16 %v205
      %v254 = vunpack.c.l.b16 %v206
      %v255 = vunpack.c.l.b16 %v207
      %v256 = vunpack.c.l.b16 %v208
      %v257 = vunpack.c.l.b16 %v209
      %v258 = vunpack.c.l.b16 %v210
      %v259 = vunpack.c.l.b16 %v211
      %v260 = vunpack.c.l.b16 %v212
      %v261 = vunpack.c.l.b16 %v213
      %v262 = vunpack.c.l.b16 %v214
      %v263 = vunpack.c.l.b16 %v215
      %v264 = vunpack.c.l.b16 %v216
      %v265 = vunpack.c.l.b16 %v217
      %v266 = vunpack.c.l.b16 %v218
      %v267 = vpack.c.b16 %v252, %v251
      %v268 = vpack.c.b16 %v254, %v253
      %v269 = vpack.c.b16 %v256, %v255
      %v270 = vpack.c.b16 %v258, %v257
      %v271 = vpack.c.b16 %v260, %v259
      %v272 = vpack.c.b16 %v262, %v261
      %v273 = vpack.c.b16 %v264, %v263
      %v274 = vpack.c.b16 %v266, %v265
      %v299 = vunpack.c.l.b16 %v219
      %v300 = vunpack.c.l.b16 %v220
      %v301 = vunpack.c.l.b16 %v221
      %v302 = vunpack.c.l.b16 %v222
      %v303 = vunpack.c.l.b16 %v223
      %v304 = vunpack.c.l.b16 %v224
      %v305 = vunpack.c.l.b16 %v225
      %v306 = vunpack.c.l.b16 %v226
      %v307 = vunpack.c.l.b16 %v227
      %v308 = vunpack.c.l.b16 %v228
      %v309 = vunpack.c.l.b16 %v229
      %v310 = vunpack.c.l.b16 %v230
      %v311 = vunpack.c.l.b16 %v231
      %v312 = vunpack.c.l.b16 %v232
      %v313 = vunpack.c.l.b16 %v233
      %v314 = vunpack.c.l.b16 %v234
      %v315 = vpack.c.b16 %v300, %v299
      %v316 = vpack.c.b16 %v302, %v301
      %v317 = vpack.c.b16 %v304, %v303
      %v318 = vpack.c.b16 %v306, %v305
      %v319 = vpack.c.b16 %v308, %v307
      %v320 = vpack.c.b16 %v310, %v309
      %v321 = vpack.c.b16 %v312, %v311
      %v322 = vpack.c.b16 %v314, %v313
      %331 = vmatprep.subr.bf16.mxu0 0
      %332 = vmatpush1.bf16.msra.mxu0 %v322
      %333 = vmatprep.subr.bf16.mxu0 0
      %334 = vmatpush1.bf16.msra.mxu0 %v321
      %335 = vmatprep.subr.bf16.mxu0 0
      %336 = vmatpush1.bf16.msra.mxu0 %v320
      %337 = vmatprep.subr.bf16.mxu0 0
      %338 = vmatpush1.bf16.msra.mxu0 %v319
      %339 = vmatprep.subr.bf16.mxu0 0
      %340 = vmatpush1.bf16.msra.mxu0 %v318
      %341 = vmatprep.subr.bf16.mxu0 0
      %342 = vmatpush1.bf16.msra.mxu0 %v317
      %343 = vmatprep.subr.bf16.mxu0 0
      %344 = vmatpush1.bf16.msra.mxu0 %v316
      %345 = vmatprep.subr.bf16.mxu0 0
      %346 = vmatpush1.bf16.msra.mxu0 %v315
      %347 = vmatprep.subr.bf16.mxu0 0
      %348 = vmatpush2.bf16.msra.mxu0 0
      %349 = vmatprep.subr.bf16.mxu0 0
      %350 = vmatpush2.bf16.msra.mxu0 0
      %351 = vmatprep.subr.bf16.mxu0 0
      %352 = vmatpush2.bf16.msra.mxu0 0
      %353 = vmatprep.subr.bf16.mxu0 0
      %354 = vmatpush2.bf16.msra.mxu0 0
      %355 = vmatprep.subr.bf16.mxu0 0
      %356 = vmatpush2.bf16.msra.mxu0 0
      %357 = vmatprep.subr.bf16.mxu0 0
      %358 = vmatpush2.bf16.msra.mxu0 0
      %359 = vmatprep.subr.bf16.mxu0 0
      %360 = vmatpush2.bf16.msra.mxu0 0
      %361 = vmatprep.subr.bf16.mxu0 0
      %362 = vmatpush2.bf16.msra.mxu0 0
      %363 = vmatprep.mubr.bf16.mxu0 0
      %364 = vmatmul.mubr.bf16.gmra.mxu0 %v267
      %v365 = vpop.f32.mrf.mxu0
      %v366 = vadd.f32 0.0, %v365
      %v367 = vpop.f32.mrf.mxu0
      %v368 = vpop.f32.mrf.mxu0
      %v369 = vadd.f32 0.0, %v368
      %v370 = vpop.f32.mrf.mxu0
      %371 = vmatprep.mubr.bf16.mxu0 0
      %372 = vmatmul.mubr.bf16.gmra.mxu0 %v268
      %v373 = vpop.f32.mrf.mxu0
      %v374 = vadd.f32 0.0, %v373
      %v375 = vpop.f32.mrf.mxu0
      %v376 = vpop.f32.mrf.mxu0
      %v377 = vadd.f32 0.0, %v376
      %v378 = vpop.f32.mrf.mxu0
      %379 = vmatprep.mubr.bf16.mxu0 0
      %380 = vmatmul.mubr.bf16.gmra.mxu0 %v269
      %v381 = vpop.f32.mrf.mxu0
      %v382 = vadd.f32 0.0, %v381
      %v383 = vpop.f32.mrf.mxu0
      %v384 = vpop.f32.mrf.mxu0
      %v385 = vadd.f32 0.0, %v384
      %v386 = vpop.f32.mrf.mxu0
      %387 = vmatprep.mubr.bf16.mxu0 0
      %388 = vmatmul.mubr.bf16.gmra.mxu0 %v270
      %v389 = vpop.f32.mrf.mxu0
      %v390 = vadd.f32 0.0, %v389
      %v391 = vpop.f32.mrf.mxu0
      %v392 = vpop.f32.mrf.mxu0
      %v393 = vadd.f32 0.0, %v392
      %v394 = vpop.f32.mrf.mxu0
      %395 = vmatprep.mubr.bf16.mxu0 0
      %396 = vmatmul.mubr.bf16.gmra.mxu0 %v271
      %v397 = vpop.f32.mrf.mxu0
      %v398 = vadd.f32 0.0, %v397
      %v399 = vpop.f32.mrf.mxu0
      %v400 = vpop.f32.mrf.mxu0
      %v401 = vadd.f32 0.0, %v400
      %v402 = vpop.f32.mrf.mxu0
      %403 = vmatprep.mubr.bf16.mxu0 0
      %404 = vmatmul.mubr.bf16.gmra.mxu0 %v272
      %v405 = vpop.f32.mrf.mxu0
      %v406 = vadd.f32 0.0, %v405
      %v407 = vpop.f32.mrf.mxu0
      %v408 = vpop.f32.mrf.mxu0
      %v409 = vadd.f32 0.0, %v408
      %v410 = vpop.f32.mrf.mxu0
      %411 = vmatprep.mubr.bf16.mxu0 0
      %412 = vmatmul.mubr.bf16.gmra.mxu0 %v273
      %v413 = vpop.f32.mrf.mxu0
      %v414 = vadd.f32 0.0, %v413
      %v415 = vpop.f32.mrf.mxu0
      %v416 = vpop.f32.mrf.mxu0
      %v417 = vadd.f32 0.0, %v416
      %v418 = vpop.f32.mrf.mxu0
      %419 = vmatprep.mubr.bf16.mxu0 0
      %420 = vmatmul.mubr.bf16.gmra.mxu0 %v274
      %v421 = vpop.f32.mrf.mxu0
      %v422 = vadd.f32 0.0, %v421
      %v423 = vpop.f32.mrf.mxu0
      %v424 = vpop.f32.mrf.mxu0
      %v425 = vadd.f32 0.0, %v424
      %v426 = vpop.f32.mrf.mxu0
      %427 = vdwg.mxu0
      %428 = vst [vmem:[%s194] sm:$0xff] %v366
      %429 = vst [vmem:[%s194 + $0x8] sm:$0xff] %v369
      %430 = vst [vmem:[%s194 + $0x10] sm:$0xff] %v374
      %431 = vst [vmem:[%s194 + $0x18] sm:$0xff] %v377
      %432 = vst [vmem:[%s194 + $0x20] sm:$0xff] %v382
      %433 = vst [vmem:[%s194 + $0x28] sm:$0xff] %v385
      %434 = vst [vmem:[%s194 + $0x30] sm:$0xff] %v390
      %435 = vst [vmem:[%s194 + $0x38] sm:$0xff] %v393
      %436 = vst [vmem:[%s194 + $0x40] sm:$0xff] %v398
      %437 = vst [vmem:[%s194 + $0x48] sm:$0xff] %v401
      %438 = vst [vmem:[%s194 + $0x50] sm:$0xff] %v406
      %439 = vst [vmem:[%s194 + $0x58] sm:$0xff] %v409
      %440 = vst [vmem:[%s194 + $0x60] sm:$0xff] %v414
      %441 = vst [vmem:[%s194 + $0x68] sm:$0xff] %v417
      %442 = vst [vmem:[%s194 + $0x70] sm:$0xff] %v422
      %443 = vst [vmem:[%s194 + $0x78] sm:$0xff] %v425
      %v444 = vld [vmem:[%s3] sm:$0x1]
      %v445 = vadd.f32 %v366, %v369
      %v446 = vadd.f32 %v445, %v374
      %v447 = vadd.f32 %v446, %v377
      %v448 = vadd.f32 %v447, %v382
      %v449 = vadd.f32 %v448, %v385
      %v450 = vadd.f32 %v449, %v390
      %v451 = vadd.f32 %v450, %v393
      %v452 = vadd.f32 %v451, %v398
      %v453 = vadd.f32 %v452, %v401
      %v454 = vadd.f32 %v453, %v406
      %v455 = vadd.f32 %v454, %v409
      %v456 = vadd.f32 %v455, %v414
      %v457 = vadd.f32 %v456, %v417
      %v458 = vadd.f32 %v457, %v422
      %v459 = vadd.f32 %v458, %v425
      %v460 = vrot.slane %v459, 4
      %v461 = vadd.f32 %v459, %v460
      %v462 = vrot.slane %v461, 2
      %v463 = vadd.f32 %v461, %v462
      %v464 = vrot.slane %v463, 1
      %v465 = vadd.f32 %v463, %v464
      %v466 = vadd.f32 %v444, %v465
      %467 = vst [vmem:[%s3] sm:$0x1] %v466
      %v468 = vld [vmem:[%s4] sm:$0x1]
      %v469 = vmul.f32 %v366, %v366
      %v470 = vmul.f32 %v369, %v369
      %v471 = vmul.f32 %v374, %v374
      %v472 = vmul.f32 %v377, %v377
      %v473 = vmul.f32 %v382, %v382
      %v474 = vmul.f32 %v385, %v385
      %v475 = vmul.f32 %v390, %v390
      %v476 = vmul.f32 %v393, %v393
      %v477 = vmul.f32 %v398, %v398
      %v478 = vmul.f32 %v401, %v401
      %v479 = vmul.f32 %v406, %v406
      %v480 = vmul.f32 %v409, %v409
      %v481 = vmul.f32 %v414, %v414
      %v482 = vmul.f32 %v417, %v417
      %v483 = vmul.f32 %v422, %v422
      %v484 = vmul.f32 %v425, %v425
      %v485 = vadd.f32 %v469, %v470
      %v486 = vadd.f32 %v485, %v471
      %v487 = vadd.f32 %v486, %v472
      %v488 = vadd.f32 %v487, %v473
      %v489 = vadd.f32 %v488, %v474
      %v490 = vadd.f32 %v489, %v475
      %v491 = vadd.f32 %v490, %v476
      %v492 = vadd.f32 %v491, %v477
      %v493 = vadd.f32 %v492, %v478
      %v494 = vadd.f32 %v493, %v479
      %v495 = vadd.f32 %v494, %v480
      %v496 = vadd.f32 %v495, %v481
      %v497 = vadd.f32 %v496, %v482
      %v498 = vadd.f32 %v497, %v483
      %v499 = vadd.f32 %v498, %v484
      %v500 = vrot.slane %v499, 4
      %v501 = vadd.f32 %v499, %v500
      %v502 = vrot.slane %v501, 2
      %v503 = vadd.f32 %v501, %v502
      %v504 = vrot.slane %v503, 1
      %v505 = vadd.f32 %v503, %v504
      %v506 = vadd.f32 %v468, %v505
      %507 = vst [vmem:[%s4] sm:$0x1] %v506
      %s508 = smul.u32 16, %s16
      %p509 = scmp.lt.s32.totalorder %s508, 63
      %s510 = scalar_select %p509, %s508, 63
      %s511 = smul.addr %s510, 8
      %s512 = scalar_lea.vmem %s2, %s511
      // Predicated region
      $region33: #{double_conv_forward.4} parent=27 // pred_check
        %p513 = pneg %p81
      $region34: #{double_conv_forward.4} parent=27 // pred_check_branch
        %515 = sbr.rel (%p513) target = $region36
      $region35: #{double_conv_forward.4} parent=27 // pred_region
        %s516 = smul.u32 16, %s16
      $region36: #{double_conv_forward.4} parent=27 // pred_fallthru
        _
      // Predicated region
      $region37: #{double_conv_forward.4} parent=27 // pred_check
        %p517 = pneg %p102
      $region38: #{double_conv_forward.4} parent=27 // pred_check_branch
        %519 = sbr.rel (%p517) target = $region40
      $region39: #{double_conv_forward.4} parent=27 // pred_region
        _
      $region40: #{double_conv_forward.4} parent=27 // pred_fallthru
        _
      // Predicated region
      $region41: #{double_conv_forward.4} parent=27 // pred_check
        %p520 = pneg %p123
      $region42: #{double_conv_forward.4} parent=27 // pred_check_branch
        %522 = sbr.rel (%p520) target = $region44
      $region43: #{double_conv_forward.4} parent=27 // pred_region
        _
      $region44: #{double_conv_forward.4} parent=27 // pred_fallthru
        _
      // Predicated region
      $region45: #{double_conv_forward.4} parent=27 // pred_check
        %p523 = pneg %p102
      $region46: #{double_conv_forward.4} parent=27 // pred_check_branch
        %525 = sbr.rel (%p523) target = $region48
      $region47: #{double_conv_forward.4} parent=27 // pred_region
        _
      $region48: #{double_conv_forward.4} parent=27 // pred_fallthru
        _
      // Predicated region
      $region49: #{double_conv_forward.4} parent=27 // pred_check
        %p526 = pneg %p123
      $region50: #{double_conv_forward.4} parent=27 // pred_check_branch
        %528 = sbr.rel (%p526) target = $region52
      $region51: #{double_conv_forward.4} parent=27 // pred_region
        _
      $region52: #{double_conv_forward.4} parent=27 // pred_fallthru
        _
    $region28: #{double_conv_forward.4} parent=5 // pred_fallthru
      _
    %p529 = scmp.le.s32.totalorder 2, %s11
    // Predicated region
    $region53: #{double_conv_forward.4} parent=5 // pred_check
      %p530 = pneg %p529
    $region54: #{double_conv_forward.4} parent=5 // pred_check_branch
      %532 = sbr.rel (%p530) target = $region56
    $region55: #{double_conv_forward.4} parent=5 // pred_region
      %s533 = ssub.s32 %s11, 2
      // Predicated region
      $region57: #{double_conv_forward.4} parent=55 // pred_check
        %p534 = pneg %p87
      $region58: #{double_conv_forward.4} parent=55 // pred_check_branch
        %536 = sbr.rel (%p534) target = $region60
      $region59: #{double_conv_forward.4} parent=55 // pred_region
        %s537 = smul.u32 16, %s17
        %p538 = scmp.lt.s32.totalorder %s537, 63
        %s539 = scalar_select %p538, %s537, 63
        %s540 = smul.addr %s539, 8
        %s541 = scalar_lea.vmem %s2, %s540
      $region60: #{double_conv_forward.4} parent=55 // pred_fallthru
        _
    $region56: #{double_conv_forward.4} parent=5 // pred_fallthru
      _
  $region6: #{double_conv_forward.4} parent=0 // loop_footer
    %s15 = sadd.s32 1, %s11
  $region7: #{double_conv_forward.4} parent=0 // loop_footer_branch
    %10 = sbr.rel target = $region3
  $region8: #{double_conv_forward.4} parent=0 // loop_exit
    _

// kernel: double_conv_forward.7
$region0: #{double_conv_forward.7}
  #allocation0 [shape = 'u32[]', space=smem, size = 0x4, offset = 0x4, fixed_abs, tag = 'smem constant byte address 0x4 - core index']
  #allocation1 [shape = 'u32[144,128]{1,0:T(1,128)}', space=vmem, size = 0x12000, scoped, tag = 'internal scratch']
  %s0 = inlined_call_operand.vmem [shape: f32[512,128], index: 0, kind: input, shape index: {}]
  %s1 = inlined_call_operand.vmem [shape: f32[1,128], index: 1, kind: input, shape index: {}]
  %s2 = inlined_call_operand.vmem [shape: f32[1,128], index: 2, kind: input, shape index: {}]
  %s3 = inlined_call_operand.vmem [shape: f32[512,128], index: 3, kind: output, shape index: {}]
  %s4 = sld [smem:[#allocation0]]
  $region45: #{double_conv_forward.7} parent=0
    _
  %s6 = ssub.s32 1, %s4
  %s7 = scalar_select 0, %s6, %s4
  loop: start=0, step=1, limit=6
  $region2: #{double_conv_forward.7} parent=0 // loop_pre_header
    _
  $region3: #{double_conv_forward.7} parent=0 // loop_header
    %s9 = sphi 0, %s13
    %p10 = scmp.ge.s32.totalorder %s9, 6
    %s19 = sphi 0, %s21
    %s22 = sphi 0, %s19
    %s23 = sphi 0, %s22
    %s39 = sphi 0, %s23
    %s43 = sphi 0, %s43
    %s45 = sphi 0, %s43
    %s46 = sphi 0, %s45
    %s60 = sphi 0, %s46
    %s64 = sphi 0, %s64
    %s66 = sphi 0, %s64
    %s67 = sphi 0, %s66
    %s81 = sphi 0, %s67
    %s87 = sphi 0, %s89
    %s90 = sphi 0, %s87
    %s91 = sphi 0, %s90
    %s107 = sphi 0, %s91
  $region4: #{double_conv_forward.7} parent=0 // loop_header_branch
    %12 = sbr.rel (%p10) target = $region8
  $region5: #{double_conv_forward.7} parent=0 // loop_body
    %s14 = ssub.s32 %s9, 1
    %s15 = ssub.s32 %s9, 2
    %s16 = sadd.s32 %s9, 1
    %s17 = ssub.s32 %s9, %s16
    %p18 = scmp.eq.s32.totalorder %s17, 0
    %s20 = sadd.s32 %s19, 1
    %s21 = scalar_select %p18, %s19, %s20
    %p24 = pneg %p18
    %p25 = scmp.eq.s32.totalorder %s9, 3
    %p26 = por %p24, %p25
    %p27 = scmp.ne.s32.totalorder %s19, %s22
    %p28 = scmp.eq.s32.totalorder %s9, 0
    %p29 = por %p27, %p28
    %p30 = scmp.ne.s32.totalorder %s19, %s22
    %p31 = scmp.eq.s32.totalorder %s14, 3
    %p32 = por %p30, %p31
    %p33 = scmp.ne.s32.totalorder %s22, %s23
    %p34 = scmp.eq.s32.totalorder %s14, 0
    %p35 = por %p33, %p34
    %p36 = scmp.ne.s32.totalorder %s22, %s23
    %p37 = scmp.eq.s32.totalorder %s15, 3
    %p38 = por %p36, %p37
    %p40 = scmp.ne.s32.totalorder %s23, %s39
    %p41 = scmp.eq.s32.totalorder %s15, 0
    %p42 = por %p40, %p41
    %s44 = sadd.s32 %s43, 1
    %p47 = scmp.eq.s32.totalorder %s9, 3
    %p48 = scmp.ne.s32.totalorder %s43, %s45
    %p49 = scmp.eq.s32.totalorder %s9, 0
    %p50 = por %p48, %p49
    %p51 = scmp.ne.s32.totalorder %s43, %s45
    %p52 = scmp.eq.s32.totalorder %s14, 3
    %p53 = por %p51, %p52
    %p54 = scmp.ne.s32.totalorder %s45, %s46
    %p55 = scmp.eq.s32.totalorder %s14, 0
    %p56 = por %p54, %p55
    %p57 = scmp.ne.s32.totalorder %s45, %s46
    %p58 = scmp.eq.s32.totalorder %s15, 3
    %p59 = por %p57, %p58
    %p61 = scmp.ne.s32.totalorder %s46, %s60
    %p62 = scmp.eq.s32.totalorder %s15, 0
    %p63 = por %p61, %p62
    %s65 = sadd.s32 %s64, 1
    %p68 = scmp.eq.s32.totalorder %s9, 3
    %p69 = scmp.ne.s32.totalorder %s64, %s66
    %p70 = scmp.eq.s32.totalorder %s9, 0
    %p71 = por %p69, %p70
    %p72 = scmp.ne.s32.totalorder %s64, %s66
    %p73 = scmp.eq.s32.totalorder %s14, 3
    %p74 = por %p72, %p73
    %p75 = scmp.ne.s32.totalorder %s66, %s67
    %p76 = scmp.eq.s32.totalorder %s14, 0
    %p77 = por %p75, %p76
    %p78 = scmp.ne.s32.totalorder %s66, %s67
    %p79 = scmp.eq.s32.totalorder %s15, 3
    %p80 = por %p78, %p79
    %p82 = scmp.ne.s32.totalorder %s67, %s81
    %p83 = scmp.eq.s32.totalorder %s15, 0
    %p84 = por %p82, %p83
    %s85 = ssub.s32 %s9, %s16
    %p86 = scmp.eq.s32.totalorder %s85, 0
    %s88 = sadd.s32 %s87, 1
    %s89 = scalar_select %p86, %s87, %s88
    %p92 = pneg %p86
    %p93 = scmp.eq.s32.totalorder %s9, 3
    %p94 = por %p92, %p93
    %p95 = scmp.ne.s32.totalorder %s87, %s90
    %p96 = scmp.eq.s32.totalorder %s9, 0
    %p97 = por %p95, %p96
    %p98 = scmp.ne.s32.totalorder %s87, %s90
    %p99 = scmp.eq.s32.totalorder %s14, 3
    %p100 = por %p98, %p99
    %p101 = scmp.ne.s32.totalorder %s90, %s91
    %p102 = scmp.eq.s32.totalorder %s14, 0
    %p103 = por %p101, %p102
    %p104 = scmp.ne.s32.totalorder %s90, %s91
    %p105 = scmp.eq.s32.totalorder %s15, 3
    %p106 = por %p104, %p105
    %p108 = scmp.ne.s32.totalorder %s91, %s107
    %p109 = scmp.eq.s32.totalorder %s15, 0
    %p110 = por %p108, %p109
    %p111 = scmp.le.s32.totalorder 1, %s9
    %p112 = scmp.lt.s32.totalorder %s9, 5
    %p113 = pnand %p111, %p112
    %p114 = pneg %p113
    // Predicated region
    $region9: #{double_conv_forward.7} parent=5 // pred_check
      _
    $region10: #{double_conv_forward.7} parent=5 // pred_check_branch
      %116 = sbr.rel (%p113) target = $region12
    $region11: #{double_conv_forward.7} parent=5 // pred_region
      %s117 = ssub.s32 %s9, 1
      // Predicated region
      $region13: #{double_conv_forward.7} parent=11 // pred_check
        %p118 = pneg %p56
      $region14: #{double_conv_forward.7} parent=11 // pred_check_branch
        %120 = sbr.rel (%p118) target = $region16
      $region15: #{double_conv_forward.7} parent=11 // pred_region
        _
      $region16: #{double_conv_forward.7} parent=11 // pred_fallthru
        _
      // Predicated region
      $region17: #{double_conv_forward.7} parent=11 // pred_check
        %p121 = pneg %p77
      $region18: #{double_conv_forward.7} parent=11 // pred_check_branch
        %123 = sbr.rel (%p121) target = $region20
      $region19: #{double_conv_forward.7} parent=11 // pred_region
        _
      $region20: #{double_conv_forward.7} parent=11 // pred_fallthru
        _
    $region12: #{double_conv_forward.7} parent=5 // pred_fallthru
      _
    %p124 = scmp.lt.s32.totalorder %s9, 4
    // Predicated region
    $region21: #{double_conv_forward.7} parent=5 // pred_check
      %p125 = pneg %p124
    $region22: #{double_conv_forward.7} parent=5 // pred_check_branch
      %127 = sbr.rel (%p125) target = $region24
    $region23: #{double_conv_forward.7} parent=5 // pred_region
      // Predicated region
      $region25: #{double_conv_forward.7} parent=23 // pred_check
        %p128 = pneg %p29
      $region26: #{double_conv_forward.7} parent=23 // pred_check_branch
        %130 = sbr.rel (%p128) target = $region28
      $region27: #{double_conv_forward.7} parent=23 // pred_region
        %s131 = smul.u32 16, %s9
        %p132 = scmp.lt.s32.totalorder %s131, 63
        %s133 = scalar_select %p132, %s131, 63
        %s134 = smul.addr %s133, 8
        %s135 = scalar_lea.vmem %s0, %s134
        %s136 = smul.u32 16, %s9
      $region28: #{double_conv_forward.7} parent=23 // pred_fallthru
        _
    $region24: #{double_conv_forward.7} parent=5 // pred_fallthru
      _
    %p137 = scmp.le.s32.totalorder 1, %s9
    %p138 = scmp.lt.s32.totalorder %s9, 5
    %p139 = pnand %p137, %p138
    %p140 = pneg %p139
    // Predicated region
    $region29: #{double_conv_forward.7} parent=5 // pred_check
      _
    $region30: #{double_conv_forward.7} parent=5 // pred_check_branch
      %142 = sbr.rel (%p139) target = $region32
    $region31: #{double_conv_forward.7} parent=5 // pred_region
      %s143 = ssub.s32 %s9, 1
      %s144 = smul.u32 16, %s14
      %p145 = scmp.lt.s32.totalorder %s144, 63
      %s146 = scalar_select %p145, %s144, 63
      %s147 = smul.addr %s146, 8
      %s148 = scalar_lea.vmem %s0, %s147
      %p149 = pneg %p35
      %p150 = pneg %p32
      %p151 = pneg %p56
      %p152 = pneg %p53
      %p153 = pneg %p77
      %p154 = pneg %p74
      %p155 = pneg %p103
      %p156 = pneg %p100
      %s157 = smul.u32 16, %s14
      %p158 = scmp.lt.s32.totalorder %s157, 63
      %s159 = scalar_select %p158, %s157, 63
      %s160 = smul.addr %s159, 8
      %s161 = scalar_lea.vmem %s3, %s160
      %s162 = smul.u32 16, %s14
      %p163 = scmp.lt.s32.totalorder %s162, 63
      %s164 = scalar_select %p163, %s162, 63
      %s165 = smul.addr %s164, 8
      %s166 = scalar_lea.vmem %s0, %s165
      %s167 = smul.u32 16, %s14
      %s168 = smul.u32 16, %s14
      %p169 = scmp.lt.s32.totalorder %s168, 63
      %s170 = scalar_select %p169, %s168, 63
      %s171 = smul.addr %s170, 8
      %s172 = scalar_lea.vmem %s3, %s171
      %s173 = smul.u32 16, %s14
      %v174 = vld [vmem:[%s166] sm:$0xff]
      %v175 = vld [vmem:[%s166 + $0x8] sm:$0xff]
      %v176 = vld [vmem:[%s166 + $0x10] sm:$0xff]
      %v177 = vld [vmem:[%s166 + $0x18] sm:$0xff]
      %v178 = vld [vmem:[%s166 + $0x20] sm:$0xff]
      %v179 = vld [vmem:[%s166 + $0x28] sm:$0xff]
      %v180 = vld [vmem:[%s166 + $0x30] sm:$0xff]
      %v181 = vld [vmem:[%s166 + $0x38] sm:$0xff]
      %v182 = vld [vmem:[%s166 + $0x40] sm:$0xff]
      %v183 = vld [vmem:[%s166 + $0x48] sm:$0xff]
      %v184 = vld [vmem:[%s166 + $0x50] sm:$0xff]
      %v185 = vld [vmem:[%s166 + $0x58] sm:$0xff]
      %v186 = vld [vmem:[%s166 + $0x60] sm:$0xff]
      %v187 = vld [vmem:[%s166 + $0x68] sm:$0xff]
      %v188 = vld [vmem:[%s166 + $0x70] sm:$0xff]
      %v189 = vld [vmem:[%s166 + $0x78] sm:$0xff]
      %v190 = vld [vmem:[%s1] sm:$0x1]
      %v192 = vlaneseq
      %v193 = vshrl.u32 %v192, 7
      %v194 = vsub.s32 0, %v193
      %v195 = vrot.slane %v190, %v194
      %v197 = vmul.f32 %v174, %v195
      %v198 = vmul.f32 %v175, %v195
      %v199 = vmul.f32 %v176, %v195
      %v200 = vmul.f32 %v177, %v195
      %v201 = vmul.f32 %v178, %v195
      %v202 = vmul.f32 %v179, %v195
      %v203 = vmul.f32 %v180, %v195
      %v204 = vmul.f32 %v181, %v195
      %v205 = vmul.f32 %v182, %v195
      %v206 = vmul.f32 %v183, %v195
      %v207 = vmul.f32 %v184, %v195
      %v208 = vmul.f32 %v185, %v195
      %v209 = vmul.f32 %v186, %v195
      %v210 = vmul.f32 %v187, %v195
      %v211 = vmul.f32 %v188, %v195
      %v212 = vmul.f32 %v189, %v195
      %v213 = vld [vmem:[%s2] sm:$0x1]
      %v215 = vlaneseq
      %v216 = vshrl.u32 %v215, 7
      %v217 = vsub.s32 0, %v216
      %v218 = vrot.slane %v213, %v217
      %v220 = vadd.f32 %v197, %v218
      %v221 = vadd.f32 %v198, %v218
      %v222 = vadd.f32 %v199, %v218
      %v223 = vadd.f32 %v200, %v218
      %v224 = vadd.f32 %v201, %v218
      %v225 = vadd.f32 %v202, %v218
      %v226 = vadd.f32 %v203, %v218
      %v227 = vadd.f32 %v204, %v218
      %v228 = vadd.f32 %v205, %v218
      %v229 = vadd.f32 %v206, %v218
      %v230 = vadd.f32 %v207, %v218
      %v231 = vadd.f32 %v208, %v218
      %v232 = vadd.f32 %v209, %v218
      %v233 = vadd.f32 %v210, %v218
      %v234 = vadd.f32 %v211, %v218
      %v235 = vadd.f32 %v212, %v218
      %v236 = vmax.f32 %v220, 0.0
      %v237 = vmax.f32 %v221, 0.0
      %v238 = vmax.f32 %v222, 0.0
      %v239 = vmax.f32 %v223, 0.0
      %v240 = vmax.f32 %v224, 0.0
      %v241 = vmax.f32 %v225, 0.0
      %v242 = vmax.f32 %v226, 0.0
      %v243 = vmax.f32 %v227, 0.0
      %v244 = vmax.f32 %v228, 0.0
      %v245 = vmax.f32 %v229, 0.0
      %v246 = vmax.f32 %v230, 0.0
      %v247 = vmax.f32 %v231, 0.0
      %v248 = vmax.f32 %v232, 0.0
      %v249 = vmax.f32 %v233, 0.0
      %v250 = vmax.f32 %v234, 0.0
      %v251 = vmax.f32 %v235, 0.0
      %252 = vst [vmem:[%s172] sm:$0xff] %v236
      %253 = vst [vmem:[%s172 + $0x8] sm:$0xff] %v237
      %254 = vst [vmem:[%s172 + $0x10] sm:$0xff] %v238
      %255 = vst [vmem:[%s172 + $0x18] sm:$0xff] %v239
      %256 = vst [vmem:[%s172 + $0x20] sm:$0xff] %v240
      %257 = vst [vmem:[%s172 + $0x28] sm:$0xff] %v241
      %258 = vst [vmem:[%s172 + $0x30] sm:$0xff] %v242
      %259 = vst [vmem:[%s172 + $0x38] sm:$0xff] %v243
      %260 = vst [vmem:[%s172 + $0x40] sm:$0xff] %v244
      %261 = vst [vmem:[%s172 + $0x48] sm:$0xff] %v245
      %262 = vst [vmem:[%s172 + $0x50] sm:$0xff] %v246
      %263 = vst [vmem:[%s172 + $0x58] sm:$0xff] %v247
      %264 = vst [vmem:[%s172 + $0x60] sm:$0xff] %v248
      %265 = vst [vmem:[%s172 + $0x68] sm:$0xff] %v249
      %266 = vst [vmem:[%s172 + $0x70] sm:$0xff] %v250
      %267 = vst [vmem:[%s172 + $0x78] sm:$0xff] %v251
      %s268 = smul.u32 16, %s14
      %p269 = scmp.lt.s32.totalorder %s268, 63
      %s270 = scalar_select %p269, %s268, 63
      %s271 = smul.addr %s270, 8
      %s272 = scalar_lea.vmem %s3, %s271
      // Predicated region
      $region33: #{double_conv_forward.7} parent=31 // pred_check
        %p273 = pneg %p100
      $region34: #{double_conv_forward.7} parent=31 // pred_check_branch
        %275 = sbr.rel (%p273) target = $region36
      $region35: #{double_conv_forward.7} parent=31 // pred_region
        %s276 = smul.u32 16, %s14
      $region36: #{double_conv_forward.7} parent=31 // pred_fallthru
        _
    $region32: #{double_conv_forward.7} parent=5 // pred_fallthru
      _
    %p277 = scmp.le.s32.totalorder 2, %s9
    // Predicated region
    $region37: #{double_conv_forward.7} parent=5 // pred_check
      %p278 = pneg %p277
    $region38: #{double_conv_forward.7} parent=5 // pred_check_branch
      %280 = sbr.rel (%p278) target = $region40
    $region39: #{double_conv_forward.7} parent=5 // pred_region
      %s281 = ssub.s32 %s9, 2
      // Predicated region
      $region41: #{double_conv_forward.7} parent=39 // pred_check
        %p282 = pneg %p106
      $region42: #{double_conv_forward.7} parent=39 // pred_check_branch
        %284 = sbr.rel (%p282) target = $region44
      $region43: #{double_conv_forward.7} parent=39 // pred_region
        %s285 = smul.u32 16, %s15
        %p286 = scmp.lt.s32.totalorder %s285, 63
        %s287 = scalar_select %p286, %s285, 63
        %s288 = smul.addr %s287, 8
        %s289 = scalar_lea.vmem %s3, %s288
      $region44: #{double_conv_forward.7} parent=39 // pred_fallthru
        _
    $region40: #{double_conv_forward.7} parent=5 // pred_fallthru
      _
  $region6: #{double_conv_forward.7} parent=0 // loop_footer
    %s13 = sadd.s32 1, %s9
  $region7: #{double_conv_forward.7} parent=0 // loop_footer_branch
    %8 = sbr.rel target = $region3
  $region8: #{double_conv_forward.7} parent=0 // loop_exit
    _

</llo_original>
